<compile_context>
chip_gen: v6e
topology: v6e:2x2x1
jax: 0.10.0
libtpu: 0.0.40
codegen_flags: <defaults>
</compile_context>

<pallas_src>
import functools

import jax
import jax.numpy as jnp
from jax.experimental import pallas as pl
from jax.experimental.pallas import tpu as pltpu

LANE = 128


def _round_up(n, m):
    return ((n + m - 1) // m) * m


# --------------------------------------------------------------------------- #
# Kernel
# --------------------------------------------------------------------------- #
def _classifier_kernel(x_ref, y_ref, wg_ref, bg_ref, wv_ref, bv_ref,
                       wc_ref, bc_ref, out_ref, h_ref):
    """Grid = (batch_tiles, class_tiles); class axis innermost ("arbitrary").

    x/y:   (TB, E)        input dtype (cast to bf16 for the MXU)
    wg/wv: (E, Dp)  bf16  resident gate / value weights
    bg/bv: (1, Dp)  f32
    wc:    (Dp, TC) bf16  classifier-weight tile for this class block
    bc:    (1, TC)  f32
    out:   (TB, TC)       logits tile
    h_ref: (TB, Dp) bf16  persistent VMEM scratch: gated hidden state
    """
    # Recompute the gated hidden state only when a new batch tile starts
    # (class index wrapped back to 0); reuse it for every class tile.
    @pl.when(pl.program_id(1) == 0)
    def _():
        x = x_ref[...].astype(jnp.bfloat16)
        y = y_ref[...].astype(jnp.bfloat16)
        # bf16 MXU operands with f32 accumulation; elementwise / transcendental
        # math stays in f32 (v5e VPU/EUP have no bf16 path).
        gate = jax.nn.sigmoid(
            jnp.dot(x, wg_ref[...], preferred_element_type=jnp.float32)
            + bg_ref[...])
        value = (jnp.dot(y, wv_ref[...], preferred_element_type=jnp.float32)
                 + bv_ref[...])
        h_ref[...] = (gate * value).astype(jnp.bfloat16)

    # Classifier head for this class tile: h @ Wc_tile + bc_tile.
    out_ref[...] = (
        jnp.dot(h_ref[...], wc_ref[...], preferred_element_type=jnp.float32)
        + bc_ref[...]
    ).astype(out_ref.dtype)


# --------------------------------------------------------------------------- #
# pallas_call builder
# --------------------------------------------------------------------------- #
def _build_call(*, tile_b, tile_c, E, Dp, Cp, B, nb, nc, out_dtype,
                vmem_bytes, cost, weight_mode):
    def wspec(shape):
        # Constant block index -> fetched once; single-buffered when supported.
        if weight_mode is None:
            return pl.BlockSpec(shape, lambda i, j: (0, 0))
        return pl.BlockSpec(shape, lambda i, j: (0, 0), pipeline_mode=weight_mode)

    return pl.pallas_call(
        _classifier_kernel,
        out_shape=jax.ShapeDtypeStruct((B, Cp), out_dtype),
        grid_spec=pltpu.PrefetchScalarGridSpec(
            num_scalar_prefetch=0,
            grid=(nb, nc),
            in_specs=[
                pl.BlockSpec((tile_b, E), lambda i, j: (i, 0)),    # x
                pl.BlockSpec((tile_b, E), lambda i, j: (i, 0)),    # y
                wspec((E, Dp)),                                    # Wg
                wspec((1, Dp)),                                    # bg
                wspec((E, Dp)),                                    # Wv
                wspec((1, Dp)),                                    # bv
                pl.BlockSpec((Dp, tile_c), lambda i, j: (0, j)),   # Wc tile
                pl.BlockSpec((1, tile_c), lambda i, j: (0, j)),    # bc tile
            ],
            out_specs=pl.BlockSpec((tile_b, tile_c), lambda i, j: (i, j)),
            scratch_shapes=[pltpu.VMEM((tile_b, Dp), jnp.bfloat16)],  # h
        ),
        compiler_params=pltpu.CompilerParams(
            dimension_semantics=("parallel", "arbitrary"),
            vmem_limit_bytes=vmem_bytes),
        cost_estimate=cost,
    )


def _vmem_limit_bytes(requested):
    """~85% of this generation's physical VMEM (v5e/v6e 128 MiB, v7x 64 MiB)."""
    phys = 128 << 20
    try:  # hardware query only; never hides kernel errors
        info = pltpu.get_tpu_info()
        phys = int(getattr(info, "vmem_capacity_bytes", phys) or phys)
    except Exception:
        pass
    cap = int(phys * 0.85)
    return int(min(max(int(requested), 32 << 20), cap))


def _single_buffer_mode():
    """pl.Buffered(1) for never-changing weight blocks, if this jax supports it."""
    try:
        mode = pl.Buffered(1)
        pl.BlockSpec((8, 128), lambda i, j: (0, 0), pipeline_mode=mode)
        return mode
    except (TypeError, AttributeError):
        return None


# --------------------------------------------------------------------------- #
# Host-side wrappers
# --------------------------------------------------------------------------- #
def prepare_params(params, *, lane=LANE):
    """Pad + cast weights ONCE (not per forward call).

    out_dim / class_num are zero-padded to lane (128) multiples so hidden and
    logit lanes are dense; matmul weights are stored in bf16 for the MXU,
    biases stay f32. Padded hidden lanes stay exactly zero: gate = sigmoid(0)
    = 0.5 multiplies value = 0, and padded Wc rows are zero.
    """
    wg, bg, wv, bv, wc, bc = params
    E, D = wg.shape
    C = wc.shape[1]
    Dp = _round_up(D, lane)
    Cp = _round_up(C, lane)

    def pad2(a, rows, cols):
        return jnp.pad(a, ((0, rows - a.shape[0]), (0, cols - a.shape[1])))

    return dict(
        wg=pad2(wg, E, Dp).astype(jnp.bfloat16),
        bg=pad2(bg.reshape(1, -1), 1, Dp).astype(jnp.float32),
        wv=pad2(wv, E, Dp).astype(jnp.bfloat16),
        bv=pad2(bv.reshape(1, -1), 1, Dp).astype(jnp.float32),
        wc=pad2(wc, Dp, Cp).astype(jnp.bfloat16),
        bc=pad2(bc.reshape(1, -1), 1, Cp).astype(jnp.float32),
        class_num=C,
    )


def scalable_classifier(x, y, prepared, *, tile_b=None, tile_c=None,
                        out_dtype=jnp.float32):
    """x, y: (B, embed_dim). Returns logits (B, class_num) in out_dtype.

    Inputs may be f32 or bf16 (feed bf16 from the producer when possible; the
    in-kernel cast is then a no-op). Set out_dtype=jnp.bfloat16 to halve the
    logits writeback when the consumer tolerates it.
    """
    wg, bg, wv, bv, wc, bc = (prepared["wg"], prepared["bg"], prepared["wv"],
                              prepared["bv"], prepared["wc"], prepared["bc"])
    C = prepared["class_num"]
    B, E = x.shape
    Dp = wg.shape[1]
    Cp = wc.shape[1]
    # TODO(synk): if embed_dim is not 128-aligned in the real model, pad x/y and
    # the Wg/Wv K-dim at the producer (a per-call activation pad would add an
    # extra HBM pass).

    # Batch tile: 512 (128-aligned, good for v5e's 4x128 MXU) unless the batch
    # is smaller; ragged last tile handled by Pallas partial blocks (no jnp.pad).
    if tile_b is None:
        tile_b = min(512, _round_up(B, 8))
    tile_b = max(8, _round_up(tile_b, 8))
    nb = pl.cdiv(B, tile_b)

    # Class tile: largest 128-multiple (<= 512) dividing Cp, so Wc streams in
    # lane-dense tiles instead of having to be fully VMEM-resident.
    if tile_c is None:
        tile_c = 512 if Cp % 512 == 0 else (256 if Cp % 256 == 0 else 128)
        tile_c = min(tile_c, Cp)
    assert Cp % tile_c == 0, "tile_c must divide the padded class dim"
    nc = Cp // tile_c

    weight_mode = _single_buffer_mode()
    wbufs = 1 if weight_mode is not None else 2
    in_item = x.dtype.itemsize
    out_item = jnp.dtype(out_dtype).itemsize

    requested = (
        2 * 2 * tile_b * E * in_item                  # x, y (double-buffered)
        + wbufs * (2 * E * Dp * 2 + 2 * Dp * 4)       # Wg, Wv bf16 + bg, bv f32
        + 2 * (Dp * tile_c * 2 + tile_c * 4)          # Wc / bc tiles (double-buf)
        + 2 * tile_b * tile_c * out_item              # logits tile (double-buf)
        + tile_b * Dp * 2                             # h scratch (bf16)
        + (4 << 20)                                   # Mosaic internal headroom
    )
    vmem_bytes = _vmem_limit_bytes(requested)

    cost = pl.CostEstimate(
        flops=2 * B * E * Dp * 2 + 2 * B * Dp * Cp,
        transcendentals=B * Dp,
        bytes_accessed=(2 * B * E * in_item + B * Cp * out_item
                        + 2 * E * Dp * 2 + Dp * Cp * 2 + (2 * Dp + Cp) * 4),
    )

    build = functools.partial(
        _build_call, tile_b=tile_b, tile_c=tile_c, E=E, Dp=Dp, Cp=Cp, B=B,
        nb=nb, nc=nc, out_dtype=out_dtype, vmem_bytes=vmem_bytes, cost=cost)
    args = (x, y, wg, bg, wv, bv, wc, bc)

    if weight_mode is None:
        logits = build(weight_mode=None)(*args)
    else:
        try:
            logits = build(weight_mode=weight_mode)(*args)
        except (TypeError, ValueError, NotImplementedError,
                pltpu.LoweringException):
            # Only pipeline_mode=pl.Buffered(1) being unsupported is meant to
            # land here; any unrelated error reproduces in the fallback compile
            # below and still propagates (nothing is silently swallowed).
            logits = build(weight_mode=None)(*args)

    return logits if Cp == C else logits[:, :C]


# --------------------------------------------------------------------------- #
# Reference & test harness
# --------------------------------------------------------------------------- #
def init_params(key, embed_dim, out_dim, class_num):
    """Deterministic parameter init (PyTorch Linear-style uniform bounds)."""
    k = jax.random.split(key, 6)

    def lin(kw, kb, fan_in, fan_out):
        bound = 1.0 / jnp.sqrt(fan_in)
        w = jax.random.uniform(kw, (fan_in, fan_out), jnp.float32, -bound, bound)
        b = jax.random.uniform(kb, (1, fan_out), jnp.float32, -bound, bound)
        return w, b

    wg, bg = lin(k[0], k[1], embed_dim, out_dim)
    wv, bv = lin(k[2], k[3], embed_dim, out_dim)
    wc, bc = lin(k[4], k[5], out_dim, class_num)
    return wg, bg, wv, bv, wc, bc


def reference(x, y, params):
    wg, bg, wv, bv, wc, bc = params
    g = jax.nn.sigmoid(x @ wg + bg)
    v = y @ wv + bv
    h = g * v
    return h @ wc + bc


if __name__ == "__main__":
    batch, embed_dim, out_dim, class_num = 8, 32, 32, 8

    key = jax.random.PRNGKey(0)
    kx, ky, kp = jax.random.split(key, 3)
    x = jax.random.normal(kx, (batch, embed_dim), jnp.float32)
    y = jax.random.normal(ky, (batch, embed_dim), jnp.float32)
    params = init_params(kp, embed_dim, out_dim, class_num)
    prepared = prepare_params(params)   # one-time pad + bf16 cast (not per call)

    out = jax.block_until_ready(scalable_classifier(x, y, prepared))
    ref = reference(x, y, params)

    assert out.shape == (batch, class_num)
    # bf16 MXU operands with f32 accumulation -> relaxed tolerance vs f32 ref.
    assert jnp.allclose(out, ref, atol=2e-2, rtol=2e-2), "mismatch vs reference"

    print("KERNEL_OK")
</pallas_src>

<mosaic_0001>
module attributes {stable_mosaic.version = 11 : i64} {
  func.func @_classifier_kernel(%arg0: i32, %arg1: i32, %arg2: memref<8x32xf32, #tpu.memory_space<vmem>>, %arg3: memref<8x32xf32, #tpu.memory_space<vmem>>, %arg4: memref<32x128xbf16, #tpu.memory_space<vmem>>, %arg5: memref<1x128xf32, #tpu.memory_space<vmem>>, %arg6: memref<32x128xbf16, #tpu.memory_space<vmem>>, %arg7: memref<1x128xf32, #tpu.memory_space<vmem>>, %arg8: memref<128x128xbf16, #tpu.memory_space<vmem>>, %arg9: memref<1x128xf32, #tpu.memory_space<vmem>>, %arg10: memref<8x128xf32, #tpu.memory_space<vmem>>, %arg11: memref<8x128xbf16, #tpu.memory_space<vmem>>) attributes {dimension_semantics = [#tpu.dimension_semantics<parallel>, #tpu.dimension_semantics<arbitrary>], iteration_bounds = array<i64: 1, 1>, scalar_prefetch = 0 : i64, scratch_operands = 1 : i64, tpu.core_type = #tpu.core_type<tc>, window_params = [{transform_indices = @transform_0, window_bounds = array<i64: 8, 32>}, {transform_indices = @transform_1, window_bounds = array<i64: 8, 32>}, {pipeline_mode = #tpu.pipeline_mode<synchronous>, transform_indices = @transform_2, window_bounds = array<i64: 32, 128>}, {pipeline_mode = #tpu.pipeline_mode<synchronous>, transform_indices = @transform_3, window_bounds = array<i64: 1, 128>}, {pipeline_mode = #tpu.pipeline_mode<synchronous>, transform_indices = @transform_4, window_bounds = array<i64: 32, 128>}, {pipeline_mode = #tpu.pipeline_mode<synchronous>, transform_indices = @transform_5, window_bounds = array<i64: 1, 128>}, {transform_indices = @transform_6, window_bounds = array<i64: 128, 128>}, {transform_indices = @transform_7, window_bounds = array<i64: 1, 128>}, {transform_indices = @transform_8, window_bounds = array<i64: 8, 128>}]} {
    %c0_i32 = arith.constant 0 : i32
    %0 = arith.cmpi eq, %arg1, %c0_i32 : i32
    %1 = arith.extui %0 : i1 to i32
    %c0_i32_0 = arith.constant 0 : i32
    %2 = arith.cmpi ne, %1, %c0_i32_0 : i32
    scf.if %2 {
      %c0_8 = arith.constant 0 : index
      %c0_9 = arith.constant 0 : index
      %10 = vector.load %arg2[%c0_8, %c0_9] : memref<8x32xf32, #tpu.memory_space<vmem>>, vector<8x32xf32>
      %11 = arith.truncf %10 : vector<8x32xf32> to vector<8x32xbf16>
      %c0_10 = arith.constant 0 : index
      %c0_11 = arith.constant 0 : index
      %12 = vector.load %arg3[%c0_10, %c0_11] : memref<8x32xf32, #tpu.memory_space<vmem>>, vector<8x32xf32>
      %13 = arith.truncf %12 : vector<8x32xf32> to vector<8x32xbf16>
      %c0_12 = arith.constant 0 : index
      %c0_13 = arith.constant 0 : index
      %14 = vector.load %arg4[%c0_12, %c0_13] : memref<32x128xbf16, #tpu.memory_space<vmem>>, vector<32x128xbf16>
      %cst_14 = arith.constant dense<0.000000e+00> : vector<8x128xf32>
      %15 = tpu.matmul %11, %14, %cst_14 {dimension_numbers = #tpu.dot_dimension_numbers<[1], [0], [0], [1], [0, 0, 1, 1], [], []>} : vector<8x32xbf16>, vector<32x128xbf16>, vector<8x128xf32> -> vector<8x128xf32>
      %c0_15 = arith.constant 0 : index
      %c0_16 = arith.constant 0 : index
      %16 = vector.load %arg5[%c0_15, %c0_16] : memref<1x128xf32, #tpu.memory_space<vmem>>, vector<1x128xf32>
      %17 = vector.broadcast %16 : vector<1x128xf32> to vector<8x128xf32>
      %18 = arith.addf %15, %17 : vector<8x128xf32>
      %19 = arith.negf %18 : vector<8x128xf32>
      %20 = math.exp %19 : vector<8x128xf32>
      %cst_17 = arith.constant 1.000000e+00 : f32
      %21 = vector.broadcast %cst_17 : f32 to vector<8x128xf32>
      %22 = arith.addf %21, %20 : vector<8x128xf32>
      %23 = arith.divf %21, %22 : vector<8x128xf32>
      %c0_18 = arith.constant 0 : index
      %c0_19 = arith.constant 0 : index
      %24 = vector.load %arg6[%c0_18, %c0_19] : memref<32x128xbf16, #tpu.memory_space<vmem>>, vector<32x128xbf16>
      %cst_20 = arith.constant dense<0.000000e+00> : vector<8x128xf32>
      %25 = tpu.matmul %13, %24, %cst_20 {dimension_numbers = #tpu.dot_dimension_numbers<[1], [0], [0], [1], [0, 0, 1, 1], [], []>} : vector<8x32xbf16>, vector<32x128xbf16>, vector<8x128xf32> -> vector<8x128xf32>
      %c0_21 = arith.constant 0 : index
      %c0_22 = arith.constant 0 : index
      %26 = vector.load %arg7[%c0_21, %c0_22] : memref<1x128xf32, #tpu.memory_space<vmem>>, vector<1x128xf32>
      %27 = vector.broadcast %26 : vector<1x128xf32> to vector<8x128xf32>
      %28 = arith.addf %25, %27 : vector<8x128xf32>
      %29 = arith.mulf %23, %28 : vector<8x128xf32>
      %30 = arith.truncf %29 : vector<8x128xf32> to vector<8x128xbf16>
      %c0_23 = arith.constant 0 : index
      %c0_24 = arith.constant 0 : index
      %31 = vector.load %arg11[%c0_23, %c0_24] : memref<8x128xbf16, #tpu.memory_space<vmem>>, vector<8x128xbf16>
      tpu.vector_store %arg11[%c0_23, %c0_24], %30 {strides = array<i32>} : memref<8x128xbf16, #tpu.memory_space<vmem>>, vector<8x128xbf16>,
    } else {
    }
    %c0 = arith.constant 0 : index
    %c0_1 = arith.constant 0 : index
    %3 = vector.load %arg11[%c0, %c0_1] : memref<8x128xbf16, #tpu.memory_space<vmem>>, vector<8x128xbf16>
    %c0_2 = arith.constant 0 : index
    %c0_3 = arith.constant 0 : index
    %4 = vector.load %arg8[%c0_2, %c0_3] : memref<128x128xbf16, #tpu.memory_space<vmem>>, vector<128x128xbf16>
    %cst = arith.constant dense<0.000000e+00> : vector<8x128xf32>
    %5 = tpu.matmul %3, %4, %cst {dimension_numbers = #tpu.dot_dimension_numbers<[1], [0], [0], [1], [0, 0, 1, 1], [], []>} : vector<8x128xbf16>, vector<128x128xbf16>, vector<8x128xf32> -> vector<8x128xf32>
    %c0_4 = arith.constant 0 : index
    %c0_5 = arith.constant 0 : index
    %6 = vector.load %arg9[%c0_4, %c0_5] : memref<1x128xf32, #tpu.memory_space<vmem>>, vector<1x128xf32>
    %7 = vector.broadcast %6 : vector<1x128xf32> to vector<8x128xf32>
    %8 = arith.addf %5, %7 : vector<8x128xf32>
    %c0_6 = arith.constant 0 : index
    %c0_7 = arith.constant 0 : index
    %9 = vector.load %arg10[%c0_6, %c0_7] : memref<8x128xf32, #tpu.memory_space<vmem>>, vector<8x128xf32>
    tpu.vector_store %arg10[%c0_6, %c0_7], %8 {strides = array<i32>} : memref<8x128xf32, #tpu.memory_space<vmem>>, vector<8x128xf32>,
    return
  }
  func.func @transform_0(%arg0: i32, %arg1: i32) -> (i32, i32) {
    %c0_i32 = arith.constant 0 : i32
    %c0_i32_0 = arith.constant 0 : i32
    return %arg0, %c0_i32 : i32, i32
  }
  func.func @transform_1(%arg0: i32, %arg1: i32) -> (i32, i32) {
    %c0_i32 = arith.constant 0 : i32
    %c0_i32_0 = arith.constant 0 : i32
    return %arg0, %c0_i32 : i32, i32
  }
  func.func @transform_2(%arg0: i32, %arg1: i32) -> (i32, i32) {
    %c0_i32 = arith.constant 0 : i32
    %c0_i32_0 = arith.constant 0 : i32
    %c0_i32_1 = arith.constant 0 : i32
    return %c0_i32, %c0_i32_0 : i32, i32
  }
  func.func @transform_3(%arg0: i32, %arg1: i32) -> (i32, i32) {
    %c0_i32 = arith.constant 0 : i32
    %c0_i32_0 = arith.constant 0 : i32
    %c0_i32_1 = arith.constant 0 : i32
    return %c0_i32, %c0_i32_0 : i32, i32
  }
  func.func @transform_4(%arg0: i32, %arg1: i32) -> (i32, i32) {
    %c0_i32 = arith.constant 0 : i32
    %c0_i32_0 = arith.constant 0 : i32
    %c0_i32_1 = arith.constant 0 : i32
    return %c0_i32, %c0_i32_0 : i32, i32
  }
  func.func @transform_5(%arg0: i32, %arg1: i32) -> (i32, i32) {
    %c0_i32 = arith.constant 0 : i32
    %c0_i32_0 = arith.constant 0 : i32
    %c0_i32_1 = arith.constant 0 : i32
    return %c0_i32, %c0_i32_0 : i32, i32
  }
  func.func @transform_6(%arg0: i32, %arg1: i32) -> (i32, i32) {
    %c0_i32 = arith.constant 0 : i32
    %c0_i32_0 = arith.constant 0 : i32
    return %c0_i32, %arg1 : i32, i32
  }
  func.func @transform_7(%arg0: i32, %arg1: i32) -> (i32, i32) {
    %c0_i32 = arith.constant 0 : i32
    %c0_i32_0 = arith.constant 0 : i32
    return %c0_i32, %arg1 : i32, i32
  }
  func.func @transform_8(%arg0: i32, %arg1: i32) -> (i32, i32) {
    %c0_i32 = arith.constant 0 : i32
    return %arg0, %arg1 : i32, i32
  }
}

</mosaic_0001>

<llo_original>
// kernel: tpu_custom_call.1
$region0: #{tpu_custom_call.1}
  #allocation0 [shape = 'u32[]', space=smem, size = 0x4, offset = 0x4, fixed_abs, tag = 'smem constant byte address 0x4 - core index']
  #allocation1 [shape = 'u32[144,128]{1,0:T(1,128)}', space=vmem, size = 0x12000, scoped, tag = 'internal scratch']
  #allocation2 [shape = 'bf16[8,128]{1,0:T(8,128)(2,1)}', space=vmem, size = 0x800, scoped, tag = 'scratch operand']
  %s0 = inlined_call_operand.hbm [shape: f32[8,32], index: 0, kind: input, shape index: {}]
  %s1 = inlined_call_operand.hbm [shape: f32[8,32], index: 1, kind: input, shape index: {}]
  %s2 = inlined_call_operand.hbm [shape: bf16[32,128], index: 2, kind: input, shape index: {}]
  %s3 = inlined_call_operand.vmem [shape: f32[1,128], index: 3, kind: input, shape index: {}]
  %s4 = inlined_call_operand.hbm [shape: bf16[32,128], index: 4, kind: input, shape index: {}]
  %s5 = inlined_call_operand.vmem [shape: f32[1,128], index: 5, kind: input, shape index: {}]
  %s6 = inlined_call_operand.hbm [shape: bf16[128,128], index: 6, kind: input, shape index: {}]
  %s7 = inlined_call_operand.vmem [shape: f32[1,128], index: 7, kind: input, shape index: {}]
  %s8 = inlined_call_operand.hbm [shape: f32[8,128], index: 8, kind: output, shape index: {}]
  %s9 = sld [smem:[#allocation0]]
  $region66: #{tpu_custom_call.1} parent=0
    _
  %s11 = ssub.s32 1, %s9
  %s12 = scalar_select 0, %s11, %s9
  $region1: #{tpu_custom_call.1} parent=0
    #allocation3 [shape = 'u8[4096]{0}', space=vmem, size = 0x1000, scoped, tag = 'input window, operand 0, single buffered']
    #allocation4 [shape = 's32[1]{0}', space=sflag, size = 0x4, scoped, tag = 'scoped memory for tpu_custom_call.1']
    #allocation5 [shape = 's32[1]{0}', space=sflag, size = 0x4, scoped, tag = 'scoped memory for tpu_custom_call.1']
    #allocation6 [shape = 'u8[4096]{0}', space=vmem, size = 0x1000, scoped, tag = 'input window, operand 1, single buffered']
    #allocation7 [shape = 's32[1]{0}', space=sflag, size = 0x4, scoped, tag = 'scoped memory for tpu_custom_call.1']
    #allocation8 [shape = 'u8[8192]{0}', space=vmem, size = 0x2000, scoped, tag = 'input window, operand 2, single buffered']
    #allocation9 [shape = 'u8[8192]{0}', space=vmem, size = 0x2000, scoped, tag = 'input window, operand 4, single buffered']
    #allocation10 [shape = 's32[1]{0}', space=sflag, size = 0x4, scoped, tag = 'scoped memory for tpu_custom_call.1']
    #allocation11 [shape = 'u8[32768]{0}', space=vmem, size = 0x8000, scoped, tag = 'input window, operand 6, single buffered']
    #allocation12 [shape = 'u8[4096]{0}', space=vmem, size = 0x1000, scoped, tag = 'output window, operand 0, single buffered']
    %13 = vsyncpa [#allocation4], 0
    %14 = vsyncpa [#allocation7], 0
    %15 = vsyncpa [#allocation10], 0
    %16 = vsyncpa [#allocation5], 0
    // Predicated region
    $region2: #{tpu_custom_call.1} parent=1 // pred_check
      _
    $region3: #{tpu_custom_call.1} parent=1 // pred_check_branch
      %18 = sbr.rel (0) target = $region5
    $region4: #{tpu_custom_call.1} parent=1 // pred_region
      %s20 = ssub.s32 128, 128
      %21 = vsyncadd [#allocation4], %s20
      %s23 = sshll.u32 [#allocation3], 4
      %s24 = int_to_ptr.vmem [resolvable:$true] %s23
      %26 = dma.hbm_to_vmem [thread:$0]  %s0, 128, %s24, [#allocation4]
    $region5: #{tpu_custom_call.1} parent=1 // pred_fallthru
      _
    // Predicated region
    $region6: #{tpu_custom_call.1} parent=1 // pred_check
      _
    $region7: #{tpu_custom_call.1} parent=1 // pred_check_branch
      %28 = sbr.rel (0) target = $region9
    $region8: #{tpu_custom_call.1} parent=1 // pred_region
      %s30 = ssub.s32 128, 128
      %31 = vsyncadd [#allocation7], %s30
      %s33 = sshll.u32 [#allocation6], 4
      %s34 = int_to_ptr.vmem [resolvable:$true] %s33
      %36 = dma.hbm_to_vmem [thread:$0]  %s1, 128, %s34, [#allocation7]
    $region9: #{tpu_custom_call.1} parent=1 // pred_fallthru
      _
    // Predicated region
    $region10: #{tpu_custom_call.1} parent=1 // pred_check
      _
    $region11: #{tpu_custom_call.1} parent=1 // pred_check_branch
      %38 = sbr.rel (0) target = $region13
    $region12: #{tpu_custom_call.1} parent=1 // pred_region
      %s40 = ssub.s32 256, 256
      %41 = vsyncadd [#allocation7], %s40
      %s42 = sshll.u32 [#allocation8], 4
      %s43 = int_to_ptr.vmem [resolvable:$true] %s42
      %48 = dma.hbm_to_vmem [thread:$0]  %s2, 256, %s43, [#allocation7], 64, 64, 4
    $region13: #{tpu_custom_call.1} parent=1 // pred_fallthru
      _
    // Predicated region
    $region14: #{tpu_custom_call.1} parent=1 // pred_check
      _
    $region15: #{tpu_custom_call.1} parent=1 // pred_check_branch
      %50 = sbr.rel (0) target = $region17
    $region16: #{tpu_custom_call.1} parent=1 // pred_region
      _
    $region17: #{tpu_custom_call.1} parent=1 // pred_fallthru
      _
    // Predicated region
    $region18: #{tpu_custom_call.1} parent=1 // pred_check
      _
    $region19: #{tpu_custom_call.1} parent=1 // pred_check_branch
      %52 = sbr.rel (0) target = $region21
    $region20: #{tpu_custom_call.1} parent=1 // pred_region
      %s54 = ssub.s32 256, 256
      %55 = vsyncadd [#allocation10], %s54
      %s56 = sshll.u32 [#allocation9], 4
      %s57 = int_to_ptr.vmem [resolvable:$true] %s56
      %62 = dma.hbm_to_vmem [thread:$0]  %s4, 256, %s57, [#allocation10], 64, 64, 4
    $region21: #{tpu_custom_call.1} parent=1 // pred_fallthru
      _
    // Predicated region
    $region22: #{tpu_custom_call.1} parent=1 // pred_check
      _
    $region23: #{tpu_custom_call.1} parent=1 // pred_check_branch
      %64 = sbr.rel (0) target = $region25
    $region24: #{tpu_custom_call.1} parent=1 // pred_region
      _
    $region25: #{tpu_custom_call.1} parent=1 // pred_fallthru
      _
    // Predicated region
    $region26: #{tpu_custom_call.1} parent=1 // pred_check
      _
    $region27: #{tpu_custom_call.1} parent=1 // pred_check_branch
      %66 = sbr.rel (0) target = $region29
    $region28: #{tpu_custom_call.1} parent=1 // pred_region
      %s68 = ssub.s32 1024, 1024
      %69 = vsyncadd [#allocation10], %s68
      %s70 = sshll.u32 [#allocation11], 4
      %s71 = int_to_ptr.vmem [resolvable:$true] %s70
      %76 = dma.hbm_to_vmem [thread:$0]  %s6, 1024, %s71, [#allocation10], 64, 64, 4
    $region29: #{tpu_custom_call.1} parent=1 // pred_fallthru
      _
    // Predicated region
    $region30: #{tpu_custom_call.1} parent=1 // pred_check
      _
    $region31: #{tpu_custom_call.1} parent=1 // pred_check_branch
      %78 = sbr.rel (0) target = $region33
    $region32: #{tpu_custom_call.1} parent=1 // pred_region
      _
    $region33: #{tpu_custom_call.1} parent=1 // pred_fallthru
      _
    // Predicated region
    $region34: #{tpu_custom_call.1} parent=1 // pred_check
      _
    $region35: #{tpu_custom_call.1} parent=1 // pred_check_branch
      %80 = sbr.rel (0) target = $region37
    $region36: #{tpu_custom_call.1} parent=1 // pred_region
      %81 = dma.done [#allocation4], 128
    $region37: #{tpu_custom_call.1} parent=1 // pred_fallthru
      _
    // Predicated region
    $region38: #{tpu_custom_call.1} parent=1 // pred_check
      _
    $region39: #{tpu_custom_call.1} parent=1 // pred_check_branch
      %83 = sbr.rel (0) target = $region41
    $region40: #{tpu_custom_call.1} parent=1 // pred_region
      %84 = dma.done [#allocation7], 128
    $region41: #{tpu_custom_call.1} parent=1 // pred_fallthru
      _
    // Predicated region
    $region42: #{tpu_custom_call.1} parent=1 // pred_check
      _
    $region43: #{tpu_custom_call.1} parent=1 // pred_check_branch
      %86 = sbr.rel (0) target = $region45
    $region44: #{tpu_custom_call.1} parent=1 // pred_region
      %87 = dma.done [#allocation7], 256
    $region45: #{tpu_custom_call.1} parent=1 // pred_fallthru
      _
    // Predicated region
    $region46: #{tpu_custom_call.1} parent=1 // pred_check
      _
    $region47: #{tpu_custom_call.1} parent=1 // pred_check_branch
      %89 = sbr.rel (0) target = $region49
    $region48: #{tpu_custom_call.1} parent=1 // pred_region
      %90 = dma.done [#allocation10], 256
    $region49: #{tpu_custom_call.1} parent=1 // pred_fallthru
      _
    // Predicated region
    $region50: #{tpu_custom_call.1} parent=1 // pred_check
      _
    $region51: #{tpu_custom_call.1} parent=1 // pred_check_branch
      %92 = sbr.rel (0) target = $region53
    $region52: #{tpu_custom_call.1} parent=1 // pred_region
      %93 = dma.done [#allocation10], 1024
    $region53: #{tpu_custom_call.1} parent=1 // pred_fallthru
      _
    %p95 = scmp.eq.s32.totalorder 0, 0
    // Predicated region
    $region54: #{tpu_custom_call.1} parent=1 // pred_check
      %p96 = pneg %p95
    $region55: #{tpu_custom_call.1} parent=1 // pred_check_branch
      %98 = sbr.rel (%p96) target = $region57
    $region56: #{tpu_custom_call.1} parent=1 // pred_region
      %v99 = vld [vmem:[#allocation3] sm:$0xff]
      %v100 = vpack.c.bf16 %v99, %v99
      %v101 = vld [vmem:[#allocation6] sm:$0xff]
      %v102 = vpack.c.bf16 %v101, %v101
      %v103 = vld [vmem:[#allocation8] sm:$0xf]
      %v104 = vld [vmem:[#allocation8 + $0x4] sm:$0xf]
      %v105 = vld [vmem:[#allocation8 + $0x8] sm:$0xf]
      %v106 = vld [vmem:[#allocation8 + $0xc] sm:$0xf]
      %v107 = vld [vmem:[%s3] sm:$0x1]
      %v109 = vlaneseq
      %v110 = vshrl.u32 %v109, 7
      %v111 = vsub.s32 0, %v110
      %v112 = vrot.slane %v107, %v111
      %v118 = vunpack.c.l.b16 %v103
      %v119 = vunpack.c.l.b16 %v104
      %v120 = vunpack.c.l.b16 %v105
      %v121 = vunpack.c.l.b16 %v106
      %v122 = vpack.c.b16 %v119, %v118
      %v123 = vpack.c.b16 %v121, %v120
      %vm126 = vcmask 261120
      %v128 = vsel %vm126, %v100, 0
      %130 = vmatprep.subr.bf16.mxu0 0
      %131 = vmatpush1.bf16.msra.mxu0 0
      %132 = vmatprep.subr.bf16.mxu0 0
      %133 = vmatpush1.bf16.msra.mxu0 0
      %134 = vmatprep.subr.bf16.mxu0 0
      %135 = vmatpush1.bf16.msra.mxu0 0
      %136 = vmatprep.subr.bf16.mxu0 0
      %137 = vmatpush1.bf16.msra.mxu0 0
      %138 = vmatprep.subr.bf16.mxu0 0
      %139 = vmatpush1.bf16.msra.mxu0 0
      %140 = vmatprep.subr.bf16.mxu0 0
      %141 = vmatpush1.bf16.msra.mxu0 0
      %142 = vmatprep.subr.bf16.mxu0 0
      %143 = vmatpush1.bf16.msra.mxu0 %v123
      %144 = vmatprep.subr.bf16.mxu0 0
      %145 = vmatpush1.bf16.msra.mxu0 %v122
      %146 = vmatprep.subr.bf16.mxu0 0
      %147 = vmatpush2.bf16.msra.mxu0 0
      %148 = vmatprep.subr.bf16.mxu0 0
      %149 = vmatpush2.bf16.msra.mxu0 0
      %150 = vmatprep.subr.bf16.mxu0 0
      %151 = vmatpush2.bf16.msra.mxu0 0
      %152 = vmatprep.subr.bf16.mxu0 0
      %153 = vmatpush2.bf16.msra.mxu0 0
      %154 = vmatprep.subr.bf16.mxu0 0
      %155 = vmatpush2.bf16.msra.mxu0 0
      %156 = vmatprep.subr.bf16.mxu0 0
      %157 = vmatpush2.bf16.msra.mxu0 0
      %158 = vmatprep.subr.bf16.mxu0 0
      %159 = vmatpush2.bf16.msra.mxu0 0
      %160 = vmatprep.subr.bf16.mxu0 0
      %161 = vmatpush2.bf16.msra.mxu0 0
      %162 = vmatprep.mubr.bf16.mxu0 0
      %163 = vmatmul.mubr.bf16.gmra.mxu0 %v128
      %v164 = vpop.f32.mrf.mxu0
      %v165 = vadd.f32 %v112, %v164
      %v166 = vpop.f32.mrf.mxu0
      %v167 = vpop.f32.mrf.mxu0
      %v168 = vpop.f32.mrf.mxu0
      %169 = vdwg.mxu0
      %v170 = vxor.u32 %v165, 2147483648
      %v171 = vmul.f32 %v170, 1.442695
      %v172 = vpow.pop %v171
      %v173 = vadd.f32 %v172, 1.0
      %v174 = vrcp.pop %v173
      %v175 = vmul.f32 1.0, %v174
      %v176 = vld [vmem:[#allocation9] sm:$0xf]
      %v177 = vld [vmem:[#allocation9 + $0x4] sm:$0xf]
      %v178 = vld [vmem:[#allocation9 + $0x8] sm:$0xf]
      %v179 = vld [vmem:[#allocation9 + $0xc] sm:$0xf]
      %v180 = vld [vmem:[%s5] sm:$0x1]
      %v182 = vlaneseq
      %v183 = vshrl.u32 %v182, 7
      %v184 = vsub.s32 0, %v183
      %v185 = vrot.slane %v180, %v184
      %v191 = vunpack.c.l.b16 %v176
      %v192 = vunpack.c.l.b16 %v177
      %v193 = vunpack.c.l.b16 %v178
      %v194 = vunpack.c.l.b16 %v179
      %v195 = vpack.c.b16 %v192, %v191
      %v196 = vpack.c.b16 %v194, %v193
      %v200 = vsel %vm126, %v102, 0
      %202 = vmatprep.subr.bf16.mxu0 0
      %203 = vmatpush1.bf16.msra.mxu0 0
      %204 = vmatprep.subr.bf16.mxu0 0
      %205 = vmatpush1.bf16.msra.mxu0 0
      %206 = vmatprep.subr.bf16.mxu0 0
      %207 = vmatpush1.bf16.msra.mxu0 0
      %208 = vmatprep.subr.bf16.mxu0 0
      %209 = vmatpush1.bf16.msra.mxu0 0
      %210 = vmatprep.subr.bf16.mxu0 0
      %211 = vmatpush1.bf16.msra.mxu0 0
      %212 = vmatprep.subr.bf16.mxu0 0
      %213 = vmatpush1.bf16.msra.mxu0 0
      %214 = vmatprep.subr.bf16.mxu0 0
      %215 = vmatpush1.bf16.msra.mxu0 %v196
      %216 = vmatprep.subr.bf16.mxu0 0
      %217 = vmatpush1.bf16.msra.mxu0 %v195
      %218 = vmatprep.subr.bf16.mxu0 0
      %219 = vmatpush2.bf16.msra.mxu0 0
      %220 = vmatprep.subr.bf16.mxu0 0
      %221 = vmatpush2.bf16.msra.mxu0 0
      %222 = vmatprep.subr.bf16.mxu0 0
      %223 = vmatpush2.bf16.msra.mxu0 0
      %224 = vmatprep.subr.bf16.mxu0 0
      %225 = vmatpush2.bf16.msra.mxu0 0
      %226 = vmatprep.subr.bf16.mxu0 0
      %227 = vmatpush2.bf16.msra.mxu0 0
      %228 = vmatprep.subr.bf16.mxu0 0
      %229 = vmatpush2.bf16.msra.mxu0 0
      %230 = vmatprep.subr.bf16.mxu0 0
      %231 = vmatpush2.bf16.msra.mxu0 0
      %232 = vmatprep.subr.bf16.mxu0 0
      %233 = vmatpush2.bf16.msra.mxu0 0
      %234 = vmatprep.mubr.bf16.mxu0 0
      %235 = vmatmul.mubr.bf16.gmra.mxu0 %v200
      %v236 = vpop.f32.mrf.mxu0
      %v237 = vadd.f32 %v185, %v236
      %v238 = vpop.f32.mrf.mxu0
      %v239 = vpop.f32.mrf.mxu0
      %v240 = vpop.f32.mrf.mxu0
      %241 = vdwg.mxu0
      %v242 = vmul.f32 %v175, %v237
      %v243 = vpack.c.bf16 %v242, %v242
      %244 = vst [vmem:[#allocation2] sm:$0xf] %v243
    $region57: #{tpu_custom_call.1} parent=1 // pred_fallthru
      _
    %v245 = vld [vmem:[#allocation2] sm:$0xf]
    %v246 = vld [vmem:[#allocation11] sm:$0xf]
    %v247 = vld [vmem:[#allocation11 + $0x4] sm:$0xf]
    %v248 = vld [vmem:[#allocation11 + $0x8] sm:$0xf]
    %v249 = vld [vmem:[#allocation11 + $0xc] sm:$0xf]
    %v250 = vld [vmem:[#allocation11 + $0x10] sm:$0xf]
    %v251 = vld [vmem:[#allocation11 + $0x14] sm:$0xf]
    %v252 = vld [vmem:[#allocation11 + $0x18] sm:$0xf]
    %v253 = vld [vmem:[#allocation11 + $0x1c] sm:$0xf]
    %v254 = vld [vmem:[#allocation11 + $0x20] sm:$0xf]
    %v255 = vld [vmem:[#allocation11 + $0x24] sm:$0xf]
    %v256 = vld [vmem:[#allocation11 + $0x28] sm:$0xf]
    %v257 = vld [vmem:[#allocation11 + $0x2c] sm:$0xf]
    %v258 = vld [vmem:[#allocation11 + $0x30] sm:$0xf]
    %v259 = vld [vmem:[#allocation11 + $0x34] sm:$0xf]
    %v260 = vld [vmem:[#allocation11 + $0x38] sm:$0xf]
    %v261 = vld [vmem:[#allocation11 + $0x3c] sm:$0xf]
    %v262 = vld [vmem:[%s7] sm:$0x1]
    %v264 = vlaneseq
    %v265 = vshrl.u32 %v264, 7
    %v266 = vsub.s32 0, %v265
    %v267 = vrot.slane %v262, %v266
    %v285 = vunpack.c.l.b16 %v246
    %v286 = vunpack.c.l.b16 %v247
    %v287 = vunpack.c.l.b16 %v248
    %v288 = vunpack.c.l.b16 %v249
    %v289 = vunpack.c.l.b16 %v250
    %v290 = vunpack.c.l.b16 %v251
    %v291 = vunpack.c.l.b16 %v252
    %v292 = vunpack.c.l.b16 %v253
    %v293 = vunpack.c.l.b16 %v254
    %v294 = vunpack.c.l.b16 %v255
    %v295 = vunpack.c.l.b16 %v256
    %v296 = vunpack.c.l.b16 %v257
    %v297 = vunpack.c.l.b16 %v258
    %v298 = vunpack.c.l.b16 %v259
    %v299 = vunpack.c.l.b16 %v260
    %v300 = vunpack.c.l.b16 %v261
    %v301 = vpack.c.b16 %v286, %v285
    %v302 = vpack.c.b16 %v288, %v287
    %v303 = vpack.c.b16 %v290, %v289
    %v304 = vpack.c.b16 %v292, %v291
    %v305 = vpack.c.b16 %v294, %v293
    %v306 = vpack.c.b16 %v296, %v295
    %v307 = vpack.c.b16 %v298, %v297
    %v308 = vpack.c.b16 %v300, %v299
    %317 = vmatprep.subr.bf16.mxu0 0
    %318 = vmatpush1.bf16.msra.mxu0 %v308
    %319 = vmatprep.subr.bf16.mxu0 0
    %320 = vmatpush1.bf16.msra.mxu0 %v307
    %321 = vmatprep.subr.bf16.mxu0 0
    %322 = vmatpush1.bf16.msra.mxu0 %v306
    %323 = vmatprep.subr.bf16.mxu0 0
    %324 = vmatpush1.bf16.msra.mxu0 %v305
    %325 = vmatprep.subr.bf16.mxu0 0
    %326 = vmatpush1.bf16.msra.mxu0 %v304
    %327 = vmatprep.subr.bf16.mxu0 0
    %328 = vmatpush1.bf16.msra.mxu0 %v303
    %329 = vmatprep.subr.bf16.mxu0 0
    %330 = vmatpush1.bf16.msra.mxu0 %v302
    %331 = vmatprep.subr.bf16.mxu0 0
    %332 = vmatpush1.bf16.msra.mxu0 %v301
    %333 = vmatprep.subr.bf16.mxu0 0
    %334 = vmatpush2.bf16.msra.mxu0 0
    %335 = vmatprep.subr.bf16.mxu0 0
    %336 = vmatpush2.bf16.msra.mxu0 0
    %337 = vmatprep.subr.bf16.mxu0 0
    %338 = vmatpush2.bf16.msra.mxu0 0
    %339 = vmatprep.subr.bf16.mxu0 0
    %340 = vmatpush2.bf16.msra.mxu0 0
    %341 = vmatprep.subr.bf16.mxu0 0
    %342 = vmatpush2.bf16.msra.mxu0 0
    %343 = vmatprep.subr.bf16.mxu0 0
    %344 = vmatpush2.bf16.msra.mxu0 0
    %345 = vmatprep.subr.bf16.mxu0 0
    %346 = vmatpush2.bf16.msra.mxu0 0
    %347 = vmatprep.subr.bf16.mxu0 0
    %348 = vmatpush2.bf16.msra.mxu0 0
    %349 = vmatprep.mubr.bf16.mxu0 0
    %350 = vmatmul.mubr.bf16.gmra.mxu0 %v245
    %v351 = vpop.f32.mrf.mxu0
    %v352 = vadd.f32 %v267, %v351
    %v353 = vpop.f32.mrf.mxu0
    %v354 = vpop.f32.mrf.mxu0
    %v355 = vpop.f32.mrf.mxu0
    %356 = vdwg.mxu0
    %357 = vst [vmem:[#allocation12] sm:$0xff] %v352
    // Predicated region
    $region58: #{tpu_custom_call.1} parent=1 // pred_check
      _
    $region59: #{tpu_custom_call.1} parent=1 // pred_check_branch
      %359 = sbr.rel (0) target = $region61
    $region60: #{tpu_custom_call.1} parent=1 // pred_region
      %s361 = ssub.s32 128, 128
      %362 = vsyncadd [#allocation5], %s361
      %s364 = sshll.u32 [#allocation12], 4
      %s365 = int_to_ptr.vmem [resolvable:$true] %s364
      %367 = dma.vmem_to_hbm [thread:$0]  %s365, 128, %s8, [#allocation5]
    $region61: #{tpu_custom_call.1} parent=1 // pred_fallthru
      _
    // Predicated region
    $region62: #{tpu_custom_call.1} parent=1 // pred_check
      _
    $region63: #{tpu_custom_call.1} parent=1 // pred_check_branch
      %369 = sbr.rel (0) target = $region65
    $region64: #{tpu_custom_call.1} parent=1 // pred_region
      %370 = dma.done [#allocation5], 128
    $region65: #{tpu_custom_call.1} parent=1 // pred_fallthru
      _
    %371 = vsyncpa [#allocation4], 1
    %372 = vsyncpa [#allocation7], 1
    %373 = vsyncpa [#allocation10], 1
    %374 = vsyncpa [#allocation5], 1

</llo_original>
